<compile_context>
chip_gen: v6e
topology: v6e:2x2x1
jax: 0.10.0
libtpu: 0.0.40
codegen_flags: <defaults>
</compile_context>

<pallas_src>
import jax
import jax.numpy as jnp
from jax import lax
from jax.experimental import pallas as pl
from jax.experimental.pallas import tpu as pltpu


def _pick_tile(n, preferred):
    """Largest entry of `preferred` that divides n, else n (full extent)."""
    for p in preferred:
        if p <= n and n % p == 0:
            return p
    return n


# --------------------------------------------------------------------------- #
# Phase 1: gx = x @ Wx + b   (non-recurrent, one big parallel matmul)
# --------------------------------------------------------------------------- #
def _input_proj_kernel(x_ref, wx_ref, b_ref, gx_ref):
    x = x_ref[...].astype(wx_ref.dtype)           # bf16 operands -> native MXU rate
    g = jnp.dot(x, wx_ref[...], preferred_element_type=jnp.float32)
    gx_ref[...] = (g + b_ref[...].astype(jnp.float32)).astype(gx_ref.dtype)


def _input_projection(x2d, wx, b2d):
    M, I = x2d.shape
    H = wx.shape[1]
    TM = _pick_tile(M, (512, 256, 128, 64, 32, 16, 8))
    return pl.pallas_call(
        _input_proj_kernel,
        out_shape=jax.ShapeDtypeStruct((M, H), jnp.float32),
        grid_spec=pltpu.PrefetchScalarGridSpec(
            num_scalar_prefetch=0,
            grid=(M // TM,),
            in_specs=[
                pl.BlockSpec((TM, I), lambda m: (m, 0)),                     # x tile, streamed
                pl.BlockSpec((I, H), lambda m: (0, 0),
                             pipeline_mode=pl.Buffered(1)),                  # Wx resident, 1 buf
                pl.BlockSpec((1, H), lambda m: (0, 0),
                             pipeline_mode=pl.Buffered(1)),                  # bias resident
            ],
            out_specs=pl.BlockSpec((TM, H), lambda m: (m, 0)),
        ),
        compiler_params=pltpu.CompilerParams(
            dimension_semantics=("parallel",)),
    )(x2d, wx, b2d)


# --------------------------------------------------------------------------- #
# Phase 2: the recurrence  g_t = gx_t + h_{t-1} @ Wh ; pointwise LSTM step
# --------------------------------------------------------------------------- #
def _make_recurrent_kernel(tc):
    def kernel(gx_ref, h0_ref, wh_ref, h_out_ref, c_out_ref, h_scr):
        ti = pl.program_id(1)                     # innermost, sequential ("arbitrary") time axis

        @pl.when(ti == 0)
        def _():                                  # new batch tile -> reload its initial h
            h_scr[...] = h0_ref[...].astype(jnp.float32)

        wh = wh_ref[...]                          # resident bf16 weights (read once per chunk)

        def step(i, h_prev):
            # g_t = gx_t + h_{t-1} @ Wh   (bf16 operands, f32 accumulation on the MXU)
            g = gx_ref[i] + jnp.dot(h_prev.astype(wh.dtype), wh,
                                    preferred_element_type=jnp.float32)
            sig = jax.nn.sigmoid(g)               # == f == i == o (shared Linear in the module)
            c_tilde = jnp.tanh(g)
            ct = sig * (h_prev + c_tilde)         # == h_prev*f + c_tilde*i, factored
            ht = jnp.tanh(ct) * sig
            h_out_ref[i] = ht.astype(h_out_ref.dtype)
            c_out_ref[i] = ct.astype(c_out_ref.dtype)
            return ht

        h_scr[...] = lax.fori_loop(0, tc, step, h_scr[...], unroll=True)

    return kernel


def lstm_cell_sequence(x_seq, hidden, wx, wh, b, *, time_chunk=None, batch_tile=None):
    """Run the (non-standard) LSTMCell over a whole sequence.

    x_seq: (T, B, I); hidden = (h0, c0), each (B, H) — c0 is ignored, exactly as in the
    PyTorch forward; wx: (I, H); wh: (H, H); b: (H,).
    Returns (h_seq, c_seq), each (T, B, H): the per-step (h_t, C_t) outputs.
    """
    h0, _c0 = hidden                               # c0 unused by the module's forward
    T, B, I = x_seq.shape
    H = h0.shape[1]
    b2d = b.reshape(1, H)

    # Phase 1: non-recurrent projection hoisted out of the time loop (one big matmul).
    gx = _input_projection(x_seq.reshape(T * B, I), wx, b2d).reshape(T, B, H)

    TC = time_chunk or _pick_tile(T, (8, 4, 2))    # timesteps per grid step
    if batch_tile is not None:
        TB = batch_tile
    elif B % 16 == 0:
        TB = B // 2                                # >=2 batch tiles -> both v7x TCs get work
    else:
        TB = B
    assert T % TC == 0 and B % TB == 0

    # Resident/streamed VMEM estimate; only raise the scoped limit when actually needed.
    vmem_est = (H * H * jnp.dtype(wh.dtype).itemsize                  # Wh, single-buffered
                + 2 * TB * H * jnp.dtype(h0.dtype).itemsize           # h0, double-buffered
                + 2 * TC * TB * H * 4                                 # gx chunk (f32), double-buf
                + 2 * 2 * TC * TB * H * jnp.dtype(x_seq.dtype).itemsize   # two outputs
                + TB * H * 4)                                         # hidden-state scratch
    vmem_limit = None
    if vmem_est > 16 * 1024 * 1024:
        vmem_limit = min(int(vmem_est * 3 // 2), 96 * 1024 * 1024)
    # TODO(synk): for H large enough that Wh alone busts v7x's 64 MiB VMEM, tile the Wh
    # contraction (pltpu.emit_pipeline) instead of keeping Wh fully resident.

    h_seq, c_seq = pl.pallas_call(
        _make_recurrent_kernel(TC),
        out_shape=(
            jax.ShapeDtypeStruct((T, B, H), x_seq.dtype),   # h_t for every step
            jax.ShapeDtypeStruct((T, B, H), x_seq.dtype),   # C_t for every step
        ),
        grid_spec=pltpu.PrefetchScalarGridSpec(
            num_scalar_prefetch=0,
            grid=(B // TB, T // TC),                        # (parallel batch, serial time)
            in_specs=[
                pl.BlockSpec((TC, TB, H), lambda bi, ti: (ti, bi, 0)),   # gx chunk, streamed
                pl.BlockSpec((TB, H), lambda bi, ti: (bi, 0)),           # h0 slice
                pl.BlockSpec((H, H), lambda bi, ti: (0, 0),
                             pipeline_mode=pl.Buffered(1)),              # Wh resident, 1 buffer
            ],
            out_specs=[
                pl.BlockSpec((TC, TB, H), lambda bi, ti: (ti, bi, 0)),
                pl.BlockSpec((TC, TB, H), lambda bi, ti: (ti, bi, 0)),
            ],
            scratch_shapes=[pltpu.VMEM((TB, H), jnp.float32)],           # carried hidden state
        ),
        compiler_params=pltpu.CompilerParams(
            dimension_semantics=("parallel", "arbitrary"),
            vmem_limit_bytes=vmem_limit,
        ),
    )(gx, h0, wh)
    return h_seq, c_seq


def lstm_cell_forward(x, hidden, wx, wh, b):
    """Single-step API matching the PyTorch module: forward(x, (h, c)) -> (h_t, C_t)."""
    h_seq, c_seq = lstm_cell_sequence(x[None], hidden, wx, wh, b)
    return h_seq[0], c_seq[0]


def init_params(key, input_size, hidden_size, dtype=jnp.bfloat16):
    """Mimics nn.Linear(input_size + hidden_size, hidden_size) init:
    U(-1/sqrt(fan_in), 1/sqrt(fan_in)), with the concatenated-input weight split into Wx / Wh."""
    fan_in = input_size + hidden_size
    bound = 1.0 / (fan_in ** 0.5)
    kwx, kwh, kb = jax.random.split(key, 3)
    wx = jax.random.uniform(kwx, (input_size, hidden_size), dtype, -bound, bound)
    wh = jax.random.uniform(kwh, (hidden_size, hidden_size), dtype, -bound, bound)
    b = jax.random.uniform(kb, (hidden_size,), dtype, -bound, bound)
    return wx, wh, b


def _reference_step(x, h_prev, wx32, wh32, b32):
    """Pure-JAX f32 mirror of the PyTorch forward (c_prev intentionally unused)."""
    g = x @ wx32 + h_prev @ wh32 + b32
    sig = jax.nn.sigmoid(g)
    c_tilde = jnp.tanh(g)
    ct = h_prev * sig + c_tilde * sig
    ht = jnp.tanh(ct) * sig
    return ht, ct


def _reference_sequence(x_seq, hidden, wx, wh, b):
    h, _c = hidden
    wx32 = wx.astype(jnp.float32)
    wh32 = wh.astype(jnp.float32)
    b32 = b.astype(jnp.float32)
    hs, cs = [], []
    for t in range(x_seq.shape[0]):
        h, c = _reference_step(x_seq[t], h, wx32, wh32, b32)
        hs.append(h)
        cs.append(c)
    return jnp.stack(hs), jnp.stack(cs)


if __name__ == "__main__":
    key = jax.random.PRNGKey(0)
    # Small, hardware-aligned shapes: B multiple of 8 (sublane), I/H multiples of 128 (lane).
    T, B, INPUT, HIDDEN = 16, 8, 128, 128
    k_x, k_h, k_c, k_p = jax.random.split(key, 4)

    x_seq = jax.random.normal(k_x, (T, B, INPUT), jnp.float32)
    h0 = jax.random.normal(k_h, (B, HIDDEN), jnp.float32)
    c0 = jax.random.normal(k_c, (B, HIDDEN), jnp.float32)   # ignored by forward, as in the module
    wx, wh, b = init_params(k_p, INPUT, HIDDEN, dtype=jnp.bfloat16)

    # Fused multi-step run (the fast path): T=16 with TC=8 -> two time chunks, so the
    # cross-chunk hidden-state carry in VMEM scratch is exercised.
    h_seq, c_seq = lstm_cell_sequence(x_seq, (h0, c0), wx, wh, b)
    jax.block_until_ready((h_seq, c_seq))

    h_ref, c_ref = _reference_sequence(x_seq, (h0, c0), wx, wh, b)
    # bf16 MXU operands (weights bf16, activations cast in-kernel) vs f32 reference => loose tol.
    assert jnp.allclose(h_seq, h_ref, atol=3e-2, rtol=3e-2), "h_seq mismatch vs reference"
    assert jnp.allclose(c_seq, c_ref, atol=3e-2, rtol=3e-2), "c_seq mismatch vs reference"

    # Single-step API (matches the module's forward signature exactly).
    ht1, ct1 = lstm_cell_forward(x_seq[0], (h0, c0), wx, wh, b)
    jax.block_until_ready((ht1, ct1))
    ht1_ref, ct1_ref = _reference_step(x_seq[0], h0, wx.astype(jnp.float32),
                                       wh.astype(jnp.float32), b.astype(jnp.float32))
    assert jnp.allclose(ht1, ht1_ref, atol=3e-2, rtol=3e-2), "single-step h mismatch"
    assert jnp.allclose(ct1, ct1_ref, atol=3e-2, rtol=3e-2), "single-step c mismatch"

    print("KERNEL_OK")
</pallas_src>

<mosaic_0001>
module attributes {stable_mosaic.version = 11 : i64} {
  func.func @_input_proj_kernel(%arg0: i32, %arg1: memref<128x128xf32, #tpu.memory_space<vmem>>, %arg2: memref<128x128xbf16, #tpu.memory_space<vmem>>, %arg3: memref<1x128xbf16, #tpu.memory_space<vmem>>, %arg4: memref<128x128xf32, #tpu.memory_space<vmem>>) attributes {dimension_semantics = [#tpu.dimension_semantics<parallel>], iteration_bounds = array<i64: 1>, scalar_prefetch = 0 : i64, scratch_operands = 0 : i64, tpu.core_type = #tpu.core_type<tc>, window_params = [{transform_indices = @transform_0, window_bounds = array<i64: 128, 128>}, {pipeline_mode = #tpu.pipeline_mode<synchronous>, transform_indices = @transform_1, window_bounds = array<i64: 128, 128>}, {pipeline_mode = #tpu.pipeline_mode<synchronous>, transform_indices = @transform_2, window_bounds = array<i64: 1, 128>}, {transform_indices = @transform_3, window_bounds = array<i64: 128, 128>}]} {
    %c0 = arith.constant 0 : index
    %c0_0 = arith.constant 0 : index
    %0 = vector.load %arg1[%c0, %c0_0] : memref<128x128xf32, #tpu.memory_space<vmem>>, vector<128x128xf32>
    %1 = arith.truncf %0 : vector<128x128xf32> to vector<128x128xbf16>
    %c0_1 = arith.constant 0 : index
    %c0_2 = arith.constant 0 : index
    %2 = vector.load %arg2[%c0_1, %c0_2] : memref<128x128xbf16, #tpu.memory_space<vmem>>, vector<128x128xbf16>
    %cst = arith.constant dense<0.000000e+00> : vector<128x128xf32>
    %3 = tpu.matmul %1, %2, %cst {dimension_numbers = #tpu.dot_dimension_numbers<[1], [0], [0], [1], [0, 0, 1, 1], [], []>} : vector<128x128xbf16>, vector<128x128xbf16>, vector<128x128xf32> -> vector<128x128xf32>
    %c0_3 = arith.constant 0 : index
    %c0_4 = arith.constant 0 : index
    %4 = vector.load %arg3[%c0_3, %c0_4] : memref<1x128xbf16, #tpu.memory_space<vmem>>, vector<1x128xbf16>
    %5 = arith.extf %4 : vector<1x128xbf16> to vector<1x128xf32>
    %6 = vector.broadcast %5 : vector<1x128xf32> to vector<128x128xf32>
    %7 = arith.addf %3, %6 : vector<128x128xf32>
    %c0_5 = arith.constant 0 : index
    %c0_6 = arith.constant 0 : index
    %8 = vector.load %arg4[%c0_5, %c0_6] : memref<128x128xf32, #tpu.memory_space<vmem>>, vector<128x128xf32>
    tpu.vector_store %arg4[%c0_5, %c0_6], %7 {strides = array<i32>} : memref<128x128xf32, #tpu.memory_space<vmem>>, vector<128x128xf32>,
    return
  }
  func.func @transform_0(%arg0: i32) -> (i32, i32) {
    %c0_i32 = arith.constant 0 : i32
    %c0_i32_0 = arith.constant 0 : i32
    return %arg0, %c0_i32 : i32, i32
  }
  func.func @transform_1(%arg0: i32) -> (i32, i32) {
    %c0_i32 = arith.constant 0 : i32
    %c0_i32_0 = arith.constant 0 : i32
    %c0_i32_1 = arith.constant 0 : i32
    return %c0_i32, %c0_i32_0 : i32, i32
  }
  func.func @transform_2(%arg0: i32) -> (i32, i32) {
    %c0_i32 = arith.constant 0 : i32
    %c0_i32_0 = arith.constant 0 : i32
    %c0_i32_1 = arith.constant 0 : i32
    return %c0_i32, %c0_i32_0 : i32, i32
  }
  func.func @transform_3(%arg0: i32) -> (i32, i32) {
    %c0_i32 = arith.constant 0 : i32
    %c0_i32_0 = arith.constant 0 : i32
    return %arg0, %c0_i32 : i32, i32
  }
}

</mosaic_0001>

<llo_original>
// kernel: tpu_custom_call.1
$region0: #{tpu_custom_call.1}
  #allocation0 [shape = 'u32[]', space=smem, size = 0x4, offset = 0x4, fixed_abs, tag = 'smem constant byte address 0x4 - core index']
  #allocation1 [shape = 'u32[144,128]{1,0:T(1,128)}', space=vmem, size = 0x12000, scoped, tag = 'internal scratch']
  %s0 = inlined_call_operand.hbm [shape: f32[128,128], index: 0, kind: input, shape index: {}]
  %s1 = inlined_call_operand.hbm [shape: bf16[128,128], index: 1, kind: input, shape index: {}]
  %s2 = inlined_call_operand.vmem [shape: bf16[1,128], index: 2, kind: input, shape index: {}]
  %s3 = inlined_call_operand.hbm [shape: f32[128,128], index: 3, kind: output, shape index: {}]
  %s4 = sld [smem:[#allocation0]]
  $region30: #{tpu_custom_call.1} parent=0
    _
  %s6 = ssub.s32 1, %s4
  %s7 = scalar_select 0, %s6, %s4
  $region1: #{tpu_custom_call.1} parent=0
    #allocation2 [shape = 'u8[65536]{0}', space=vmem, size = 0x10000, scoped, tag = 'input window, operand 0, single buffered']
    #allocation3 [shape = 's32[1]{0}', space=sflag, size = 0x4, scoped, tag = 'scoped memory for tpu_custom_call.1']
    #allocation4 [shape = 's32[1]{0}', space=sflag, size = 0x4, scoped, tag = 'scoped memory for tpu_custom_call.1']
    #allocation5 [shape = 'u8[32768]{0}', space=vmem, size = 0x8000, scoped, tag = 'input window, operand 1, single buffered']
    #allocation6 [shape = 's32[1]{0}', space=sflag, size = 0x4, scoped, tag = 'scoped memory for tpu_custom_call.1']
    #allocation7 [shape = 'u8[65536]{0}', space=vmem, size = 0x10000, scoped, tag = 'output window, operand 0, single buffered']
    %8 = vsyncpa [#allocation3], 0
    %9 = vsyncpa [#allocation6], 0
    %10 = vsyncpa [#allocation4], 0
    // Predicated region
    $region2: #{tpu_custom_call.1} parent=1 // pred_check
      _
    $region3: #{tpu_custom_call.1} parent=1 // pred_check_branch
      %12 = sbr.rel (0) target = $region5
    $region4: #{tpu_custom_call.1} parent=1 // pred_region
      %s14 = ssub.s32 2048, 2048
      %15 = vsyncadd [#allocation3], %s14
      %s16 = sshll.u32 [#allocation2], 4
      %s17 = int_to_ptr.vmem [resolvable:$true] %s16
      %22 = dma.hbm_to_vmem [thread:$0]  %s0, 2048, %s17, [#allocation3], 128, 128, 8
    $region5: #{tpu_custom_call.1} parent=1 // pred_fallthru
      _
    // Predicated region
    $region6: #{tpu_custom_call.1} parent=1 // pred_check
      _
    $region7: #{tpu_custom_call.1} parent=1 // pred_check_branch
      %24 = sbr.rel (0) target = $region9
    $region8: #{tpu_custom_call.1} parent=1 // pred_region
      %s26 = ssub.s32 1024, 1024
      %27 = vsyncadd [#allocation6], %s26
      %s28 = sshll.u32 [#allocation5], 4
      %s29 = int_to_ptr.vmem [resolvable:$true] %s28
      %34 = dma.hbm_to_vmem [thread:$0]  %s1, 1024, %s29, [#allocation6], 64, 64, 4
    $region9: #{tpu_custom_call.1} parent=1 // pred_fallthru
      _
    // Predicated region
    $region10: #{tpu_custom_call.1} parent=1 // pred_check
      _
    $region11: #{tpu_custom_call.1} parent=1 // pred_check_branch
      %36 = sbr.rel (0) target = $region13
    $region12: #{tpu_custom_call.1} parent=1 // pred_region
      _
    $region13: #{tpu_custom_call.1} parent=1 // pred_fallthru
      _
    // Predicated region
    $region14: #{tpu_custom_call.1} parent=1 // pred_check
      _
    $region15: #{tpu_custom_call.1} parent=1 // pred_check_branch
      %38 = sbr.rel (0) target = $region17
    $region16: #{tpu_custom_call.1} parent=1 // pred_region
      %39 = dma.done [#allocation3], 2048
    $region17: #{tpu_custom_call.1} parent=1 // pred_fallthru
      _
    // Predicated region
    $region18: #{tpu_custom_call.1} parent=1 // pred_check
      _
    $region19: #{tpu_custom_call.1} parent=1 // pred_check_branch
      %41 = sbr.rel (0) target = $region21
    $region20: #{tpu_custom_call.1} parent=1 // pred_region
      %42 = dma.done [#allocation6], 1024
    $region21: #{tpu_custom_call.1} parent=1 // pred_fallthru
      _
    %v44 = vld [vmem:[#allocation2] sm:$0xff]
    %v45 = vld [vmem:[#allocation2 + $0x8] sm:$0xff]
    %v46 = vld [vmem:[#allocation2 + $0x10] sm:$0xff]
    %v47 = vld [vmem:[#allocation2 + $0x18] sm:$0xff]
    %v48 = vld [vmem:[#allocation2 + $0x20] sm:$0xff]
    %v49 = vld [vmem:[#allocation2 + $0x28] sm:$0xff]
    %v50 = vld [vmem:[#allocation2 + $0x30] sm:$0xff]
    %v51 = vld [vmem:[#allocation2 + $0x38] sm:$0xff]
    %v52 = vld [vmem:[#allocation2 + $0x40] sm:$0xff]
    %v53 = vld [vmem:[#allocation2 + $0x48] sm:$0xff]
    %v54 = vld [vmem:[#allocation2 + $0x50] sm:$0xff]
    %v55 = vld [vmem:[#allocation2 + $0x58] sm:$0xff]
    %v56 = vld [vmem:[#allocation2 + $0x60] sm:$0xff]
    %v57 = vld [vmem:[#allocation2 + $0x68] sm:$0xff]
    %v58 = vld [vmem:[#allocation2 + $0x70] sm:$0xff]
    %v59 = vld [vmem:[#allocation2 + $0x78] sm:$0xff]
    %v60 = vpack.c.bf16 %v45, %v44
    %v61 = vpack.c.bf16 %v47, %v46
    %v62 = vpack.c.bf16 %v49, %v48
    %v63 = vpack.c.bf16 %v51, %v50
    %v64 = vpack.c.bf16 %v53, %v52
    %v65 = vpack.c.bf16 %v55, %v54
    %v66 = vpack.c.bf16 %v57, %v56
    %v67 = vpack.c.bf16 %v59, %v58
    %v68 = vld [vmem:[#allocation5] sm:$0xf]
    %v69 = vld [vmem:[#allocation5 + $0x4] sm:$0xf]
    %v70 = vld [vmem:[#allocation5 + $0x8] sm:$0xf]
    %v71 = vld [vmem:[#allocation5 + $0xc] sm:$0xf]
    %v72 = vld [vmem:[#allocation5 + $0x10] sm:$0xf]
    %v73 = vld [vmem:[#allocation5 + $0x14] sm:$0xf]
    %v74 = vld [vmem:[#allocation5 + $0x18] sm:$0xf]
    %v75 = vld [vmem:[#allocation5 + $0x1c] sm:$0xf]
    %v76 = vld [vmem:[#allocation5 + $0x20] sm:$0xf]
    %v77 = vld [vmem:[#allocation5 + $0x24] sm:$0xf]
    %v78 = vld [vmem:[#allocation5 + $0x28] sm:$0xf]
    %v79 = vld [vmem:[#allocation5 + $0x2c] sm:$0xf]
    %v80 = vld [vmem:[#allocation5 + $0x30] sm:$0xf]
    %v81 = vld [vmem:[#allocation5 + $0x34] sm:$0xf]
    %v82 = vld [vmem:[#allocation5 + $0x38] sm:$0xf]
    %v83 = vld [vmem:[#allocation5 + $0x3c] sm:$0xf]
    %v84 = vld [vmem:[%s2] sm:$0x1]
    %v85 = vunpack.c.l.bf16 %v84
    %v86 = vlaneseq
    %v87 = vshrl.u32 %v86, 7
    %v88 = vsub.s32 0, %v87
    %v89 = vrot.slane %v85, %v88
    %v106 = vunpack.c.l.b16 %v68
    %v107 = vunpack.c.l.b16 %v69
    %v108 = vunpack.c.l.b16 %v70
    %v109 = vunpack.c.l.b16 %v71
    %v110 = vunpack.c.l.b16 %v72
    %v111 = vunpack.c.l.b16 %v73
    %v112 = vunpack.c.l.b16 %v74
    %v113 = vunpack.c.l.b16 %v75
    %v114 = vunpack.c.l.b16 %v76
    %v115 = vunpack.c.l.b16 %v77
    %v116 = vunpack.c.l.b16 %v78
    %v117 = vunpack.c.l.b16 %v79
    %v118 = vunpack.c.l.b16 %v80
    %v119 = vunpack.c.l.b16 %v81
    %v120 = vunpack.c.l.b16 %v82
    %v121 = vunpack.c.l.b16 %v83
    %v122 = vpack.c.b16 %v107, %v106
    %v123 = vpack.c.b16 %v109, %v108
    %v124 = vpack.c.b16 %v111, %v110
    %v125 = vpack.c.b16 %v113, %v112
    %v126 = vpack.c.b16 %v115, %v114
    %v127 = vpack.c.b16 %v117, %v116
    %v128 = vpack.c.b16 %v119, %v118
    %v129 = vpack.c.b16 %v121, %v120
    %138 = vmatprep.subr.bf16.mxu0 0
    %139 = vmatpush1.bf16.msra.mxu0 %v129
    %140 = vmatprep.subr.bf16.mxu0 0
    %141 = vmatpush1.bf16.msra.mxu0 %v128
    %142 = vmatprep.subr.bf16.mxu0 0
    %143 = vmatpush1.bf16.msra.mxu0 %v127
    %144 = vmatprep.subr.bf16.mxu0 0
    %145 = vmatpush1.bf16.msra.mxu0 %v126
    %146 = vmatprep.subr.bf16.mxu0 0
    %147 = vmatpush1.bf16.msra.mxu0 %v125
    %148 = vmatprep.subr.bf16.mxu0 0
    %149 = vmatpush1.bf16.msra.mxu0 %v124
    %150 = vmatprep.subr.bf16.mxu0 0
    %151 = vmatpush1.bf16.msra.mxu0 %v123
    %152 = vmatprep.subr.bf16.mxu0 0
    %153 = vmatpush1.bf16.msra.mxu0 %v122
    %154 = vmatprep.subr.bf16.mxu0 0
    %155 = vmatpush2.bf16.msra.mxu0 0
    %156 = vmatprep.subr.bf16.mxu0 0
    %157 = vmatpush2.bf16.msra.mxu0 0
    %158 = vmatprep.subr.bf16.mxu0 0
    %159 = vmatpush2.bf16.msra.mxu0 0
    %160 = vmatprep.subr.bf16.mxu0 0
    %161 = vmatpush2.bf16.msra.mxu0 0
    %162 = vmatprep.subr.bf16.mxu0 0
    %163 = vmatpush2.bf16.msra.mxu0 0
    %164 = vmatprep.subr.bf16.mxu0 0
    %165 = vmatpush2.bf16.msra.mxu0 0
    %166 = vmatprep.subr.bf16.mxu0 0
    %167 = vmatpush2.bf16.msra.mxu0 0
    %168 = vmatprep.subr.bf16.mxu0 0
    %169 = vmatpush2.bf16.msra.mxu0 0
    %170 = vmatprep.mubr.bf16.mxu0 0
    %171 = vmatmul.mubr.bf16.gmra.mxu0 %v60
    %v172 = vpop.f32.mrf.mxu0
    %v173 = vadd.f32 %v89, %v172
    %v174 = vpop.f32.mrf.mxu0
    %v175 = vpop.f32.mrf.mxu0
    %v176 = vadd.f32 %v89, %v175
    %v177 = vpop.f32.mrf.mxu0
    %178 = vmatprep.mubr.bf16.mxu0 0
    %179 = vmatmul.mubr.bf16.gmra.mxu0 %v61
    %v180 = vpop.f32.mrf.mxu0
    %v181 = vadd.f32 %v89, %v180
    %v182 = vpop.f32.mrf.mxu0
    %v183 = vpop.f32.mrf.mxu0
    %v184 = vadd.f32 %v89, %v183
    %v185 = vpop.f32.mrf.mxu0
    %186 = vmatprep.mubr.bf16.mxu0 0
    %187 = vmatmul.mubr.bf16.gmra.mxu0 %v62
    %v188 = vpop.f32.mrf.mxu0
    %v189 = vadd.f32 %v89, %v188
    %v190 = vpop.f32.mrf.mxu0
    %v191 = vpop.f32.mrf.mxu0
    %v192 = vadd.f32 %v89, %v191
    %v193 = vpop.f32.mrf.mxu0
    %194 = vmatprep.mubr.bf16.mxu0 0
    %195 = vmatmul.mubr.bf16.gmra.mxu0 %v63
    %v196 = vpop.f32.mrf.mxu0
    %v197 = vadd.f32 %v89, %v196
    %v198 = vpop.f32.mrf.mxu0
    %v199 = vpop.f32.mrf.mxu0
    %v200 = vadd.f32 %v89, %v199
    %v201 = vpop.f32.mrf.mxu0
    %202 = vmatprep.mubr.bf16.mxu0 0
    %203 = vmatmul.mubr.bf16.gmra.mxu0 %v64
    %v204 = vpop.f32.mrf.mxu0
    %v205 = vadd.f32 %v89, %v204
    %v206 = vpop.f32.mrf.mxu0
    %v207 = vpop.f32.mrf.mxu0
    %v208 = vadd.f32 %v89, %v207
    %v209 = vpop.f32.mrf.mxu0
    %210 = vmatprep.mubr.bf16.mxu0 0
    %211 = vmatmul.mubr.bf16.gmra.mxu0 %v65
    %v212 = vpop.f32.mrf.mxu0
    %v213 = vadd.f32 %v89, %v212
    %v214 = vpop.f32.mrf.mxu0
    %v215 = vpop.f32.mrf.mxu0
    %v216 = vadd.f32 %v89, %v215
    %v217 = vpop.f32.mrf.mxu0
    %218 = vmatprep.mubr.bf16.mxu0 0
    %219 = vmatmul.mubr.bf16.gmra.mxu0 %v66
    %v220 = vpop.f32.mrf.mxu0
    %v221 = vadd.f32 %v89, %v220
    %v222 = vpop.f32.mrf.mxu0
    %v223 = vpop.f32.mrf.mxu0
    %v224 = vadd.f32 %v89, %v223
    %v225 = vpop.f32.mrf.mxu0
    %226 = vmatprep.mubr.bf16.mxu0 0
    %227 = vmatmul.mubr.bf16.gmra.mxu0 %v67
    %v228 = vpop.f32.mrf.mxu0
    %v229 = vadd.f32 %v89, %v228
    %v230 = vpop.f32.mrf.mxu0
    %v231 = vpop.f32.mrf.mxu0
    %v232 = vadd.f32 %v89, %v231
    %v233 = vpop.f32.mrf.mxu0
    %234 = vdwg.mxu0
    %235 = vst [vmem:[#allocation7] sm:$0xff] %v173
    %236 = vst [vmem:[#allocation7 + $0x8] sm:$0xff] %v176
    %237 = vst [vmem:[#allocation7 + $0x10] sm:$0xff] %v181
    %238 = vst [vmem:[#allocation7 + $0x18] sm:$0xff] %v184
    %239 = vst [vmem:[#allocation7 + $0x20] sm:$0xff] %v189
    %240 = vst [vmem:[#allocation7 + $0x28] sm:$0xff] %v192
    %241 = vst [vmem:[#allocation7 + $0x30] sm:$0xff] %v197
    %242 = vst [vmem:[#allocation7 + $0x38] sm:$0xff] %v200
    %243 = vst [vmem:[#allocation7 + $0x40] sm:$0xff] %v205
    %244 = vst [vmem:[#allocation7 + $0x48] sm:$0xff] %v208
    %245 = vst [vmem:[#allocation7 + $0x50] sm:$0xff] %v213
    %246 = vst [vmem:[#allocation7 + $0x58] sm:$0xff] %v216
    %247 = vst [vmem:[#allocation7 + $0x60] sm:$0xff] %v221
    %248 = vst [vmem:[#allocation7 + $0x68] sm:$0xff] %v224
    %249 = vst [vmem:[#allocation7 + $0x70] sm:$0xff] %v229
    %250 = vst [vmem:[#allocation7 + $0x78] sm:$0xff] %v232
    // Predicated region
    $region22: #{tpu_custom_call.1} parent=1 // pred_check
      _
    $region23: #{tpu_custom_call.1} parent=1 // pred_check_branch
      %252 = sbr.rel (0) target = $region25
    $region24: #{tpu_custom_call.1} parent=1 // pred_region
      %s254 = ssub.s32 2048, 2048
      %255 = vsyncadd [#allocation4], %s254
      %s256 = sshll.u32 [#allocation7], 4
      %s257 = int_to_ptr.vmem [resolvable:$true] %s256
      %262 = dma.vmem_to_hbm [thread:$0]  %s257, 2048, %s3, [#allocation4], 128, 128, 8
    $region25: #{tpu_custom_call.1} parent=1 // pred_fallthru
      _
    // Predicated region
    $region26: #{tpu_custom_call.1} parent=1 // pred_check
      _
    $region27: #{tpu_custom_call.1} parent=1 // pred_check_branch
      %264 = sbr.rel (0) target = $region29
    $region28: #{tpu_custom_call.1} parent=1 // pred_region
      %265 = dma.done [#allocation4], 2048
    $region29: #{tpu_custom_call.1} parent=1 // pred_fallthru
      _
    %266 = vsyncpa [#allocation3], 1
    %267 = vsyncpa [#allocation6], 1
    %268 = vsyncpa [#allocation4], 1

</llo_original>
